<compile_context>
chip_gen: v5e
topology: v5e:2x2
jax: 0.10.0
libtpu: 0.0.40
codegen_flags: <defaults>
</compile_context>

<pallas_src>
import jax
import jax.numpy as jnp
from jax.experimental import pallas as pl
from jax.experimental.pallas import tpu as pltpu

# ---------------------------------------------------------------------------
# Model hyper-parameters (small, consistent with the module's forward)
# ---------------------------------------------------------------------------
HIDDEN = 32          # config.hidden_size
K = 3                # self.k
MAX_SEQ_LEN = 8      # self.max_seq_len
MLP1_OUT = 512
VOCAB = 100
BATCH = 2


# ---------------------------------------------------------------------------
# Fused Pallas kernel: embedding pool (BERT stand-in) + MLP head + argmax/gather
# ---------------------------------------------------------------------------
def _classify_kernel(vec_idx_ref,    # VMEM in   [bs, K]          int32
                     ids_ref,        # VMEM in   [K*bs, ML]       int32  (slot-major rows)
                     msk_ref,        # VMEM in   [K*bs, ML]       f32
                     emb_ref,        # VMEM in   [VOCAB, HIDDEN]  f32
                     w1_ref,         # VMEM in   [K, HIDDEN, 512] f32  (x @ W layout, per slot)
                     b1_ref,         # VMEM in   [1, 512]         f32
                     w2_ref,         # VMEM in   [512, HIDDEN]    f32
                     b2_ref,         # VMEM in   [1, HIDDEN]      f32
                     w3_ref,         # VMEM in   [HIDDEN, K]      f32  (x @ W layout)
                     b3_ref,         # VMEM in   [1, K]           f32
                     conv_ref,       # VMEM out  [bs, 1]          int32  (converted_max_idx)
                     feat_ref):      # VMEM out  [bs, HIDDEN]     f32    (x_feature)
    kb, ml = ids_ref.shape           # kb = K * bs
    vocab = emb_ref.shape[0]
    nk = w1_ref.shape[0]
    bs = kb // nk

    # ---- fused BERT stand-in: ONE one-hot slab over all K*bs rows ----------
    ids = ids_ref[...]                                               # [KB, ML] int32
    msk = msk_ref[...]                                               # [KB, ML] f32
    cnt = jnp.maximum(jnp.sum(msk, axis=1, keepdims=True), 1.0)      # [KB, 1]

    voc_iota = jax.lax.broadcasted_iota(jnp.int32, (kb, vocab), 1)   # lane iota
    # mask-weighted one-hot token-count matrix (handles repeated token ids)
    w_oh = jnp.where(ids[:, 0:1] == voc_iota, msk[:, 0:1], 0.0)      # t = 0
    for t in range(1, ml):                                           # ML = 8, unrolled
        w_oh = w_oh + jnp.where(ids[:, t:t + 1] == voc_iota, msk[:, t:t + 1], 0.0)

    # ONE pooling matmul, ONE divide, ONE tanh for all K*bs rows
    pooled = jnp.dot(w_oh, emb_ref[...], preferred_element_type=jnp.float32) / cnt
    cls = jnp.tanh(pooled)                                           # [KB, H]

    # ---- mlp1: per-slot sublane slices of cls, accumulate on the MXU -------
    acc1 = jnp.dot(cls[0:bs], w1_ref[0], preferred_element_type=jnp.float32)
    for j in range(1, nk):                                           # K = 3, unrolled
        acc1 = acc1 + jnp.dot(cls[j * bs:(j + 1) * bs], w1_ref[j],
                              preferred_element_type=jnp.float32)    # [bs, 512]
    h1 = jnp.maximum(acc1 + b1_ref[...], 0.0)                        # relu(mlp1)

    # ---- mlp2 -> x_feature --------------------------------------------------
    feat = jnp.dot(h1, w2_ref[...], preferred_element_type=jnp.float32) + b2_ref[...]
    feat_ref[...] = feat                                             # [bs, H] (pre-ReLU)
    h2 = jnp.maximum(feat, 0.0)

    # ---- mlp3 on the MXU: one [bs,32]@[32,3] push ---------------------------
    logits = jnp.dot(h2, w3_ref[...], preferred_element_type=jnp.float32) + b3_ref[...]

    # ---- vectorized argmax (first maximal column) + vec_idx gather ----------
    row_max = jnp.max(logits, axis=1, keepdims=True)                 # [bs, 1]
    col_iota = jax.lax.broadcasted_iota(jnp.int32, logits.shape, 1)  # [bs, K]
    best_c = jnp.min(jnp.where(logits == row_max, col_iota, nk),
                     axis=1, keepdims=True)                          # [bs, 1] int32
    conv = jnp.sum(jnp.where(col_iota == best_c, vec_idx_ref[...], 0),
                   axis=1, keepdims=True)                            # [bs, 1] int32
    conv_ref[...] = conv


# ---------------------------------------------------------------------------
# Wrapper: full forward (inference path, target_idx_arr is None)
# ---------------------------------------------------------------------------
def classify_forward(params, input_ids, att_masks, vec_idx_arr,
                     sen_vec_arr=None, des_vec_arr=None,
                     marked_e1=None, marked_e2=None):
    # input_ids / att_masks : [bs, K, ML] int32
    # vec_idx_arr           : [bs, K]     int32
    bs, k, ml = input_ids.shape

    # Layout plumbing only (tiny arrays): slot-major [K*bs, ML] slab so the
    # kernel pools all K*bs rows in one shot; masks pre-cast to f32.
    ids_flat = jnp.transpose(input_ids, (1, 0, 2)).reshape(k * bs, ml).astype(jnp.int32)
    msk_flat = jnp.transpose(att_masks, (1, 0, 2)).reshape(k * bs, ml).astype(jnp.float32)

    vmem = pl.BlockSpec(memory_space=pltpu.MemorySpace.VMEM)

    flops = 2 * (k * bs * VOCAB * HIDDEN        # pooling matmul
                 + bs * k * HIDDEN * MLP1_OUT   # mlp1
                 + bs * MLP1_OUT * HIDDEN       # mlp2
                 + bs * HIDDEN * k)             # mlp3
    bytes_accessed = 4 * (VOCAB * HIDDEN + k * HIDDEN * MLP1_OUT + MLP1_OUT
                          + MLP1_OUT * HIDDEN + HIDDEN + HIDDEN * k + k
                          + 2 * k * bs * ml + bs * k + bs + bs * HIDDEN)
    cost = pl.CostEstimate(flops=flops, transcendentals=k * bs * HIDDEN,
                           bytes_accessed=bytes_accessed)

    conv2d, feat = pl.pallas_call(
        _classify_kernel,
        out_shape=(
            jax.ShapeDtypeStruct((bs, 1), jnp.int32),         # converted_max_idx
            jax.ShapeDtypeStruct((bs, HIDDEN), jnp.float32),  # x_feature
        ),
        in_specs=[vmem] * 10,
        out_specs=(vmem, vmem),
        cost_estimate=cost,
    )(vec_idx_arr.astype(jnp.int32), ids_flat, msk_flat,
      params["emb"], params["w1"], params["b1"],
      params["w2"], params["b2"], params["w3"], params["b3"])
    return conv2d[:, 0], feat


# ---------------------------------------------------------------------------
# Pure-JAX reference (same stand-in math, monolithic formulation)
# ---------------------------------------------------------------------------
def reference_forward(params, input_ids, att_masks, vec_idx_arr):
    bs, k, ml = input_ids.shape
    flat_ids = input_ids.reshape(-1, ml)
    flat_msk = att_masks.reshape(-1, ml).astype(jnp.float32)
    e = params["emb"][flat_ids]                                     # [bs*k, ml, H]
    pooled = jnp.sum(e * flat_msk[..., None], axis=1) / jnp.maximum(
        jnp.sum(flat_msk, axis=1, keepdims=True), 1.0)
    cls = jnp.tanh(pooled).reshape(bs, k * HIDDEN)
    w1 = params["w1"].reshape(k * HIDDEN, MLP1_OUT)
    h1 = jnp.maximum(cls @ w1 + params["b1"], 0.0)
    feat = h1 @ params["w2"] + params["b2"]
    h2 = jnp.maximum(feat, 0.0)
    logits = h2 @ params["w3"] + params["b3"]
    idx = jnp.argmax(logits, axis=1)
    conv = vec_idx_arr[jnp.arange(bs), idx]
    return conv, feat


# ---------------------------------------------------------------------------
# Deterministic parameter init (kernel-friendly layouts)
# ---------------------------------------------------------------------------
def init_params(key):
    ks = jax.random.split(key, 4)

    def lin_w(kw, fan_in, shape):
        bound = 1.0 / (fan_in ** 0.5)
        return jax.random.uniform(kw, shape, jnp.float32, -bound, bound)

    return {
        "emb": jax.random.normal(ks[0], (VOCAB, HIDDEN), jnp.float32),
        # mlp1 weight in x@W layout, pre-split per slot: [K, HIDDEN, 512]
        "w1": lin_w(ks[1], K * HIDDEN, (K, HIDDEN, MLP1_OUT)),
        "b1": jnp.zeros((1, MLP1_OUT), jnp.float32),
        "w2": lin_w(ks[2], MLP1_OUT, (MLP1_OUT, HIDDEN)),
        "b2": jnp.zeros((1, HIDDEN), jnp.float32),
        # mlp3 weight in x@W layout: [HIDDEN, K] (so it rides the MXU)
        "w3": lin_w(ks[3], HIDDEN, (HIDDEN, K)),
        "b3": jnp.zeros((1, K), jnp.float32),
    }


if __name__ == "__main__":
    key = jax.random.PRNGKey(0)
    kp, ki, km, kv = jax.random.split(key, 4)

    params = init_params(kp)

    input_ids = jax.random.randint(ki, (BATCH, K, MAX_SEQ_LEN), 0, VOCAB, jnp.int32)
    att_masks = (jax.random.uniform(km, (BATCH, K, MAX_SEQ_LEN)) > 0.2).astype(jnp.int32)
    att_masks = att_masks.at[:, :, 0].set(1)   # CLS position always attended
    vec_idx_arr = jax.random.randint(kv, (BATCH, K), 0, 1000, jnp.int32)

    fwd = jax.jit(classify_forward)
    converted_max_idx, x_feature = fwd(params, input_ids, att_masks, vec_idx_arr)
    jax.block_until_ready((converted_max_idx, x_feature))

    assert converted_max_idx.shape == (BATCH,)
    assert x_feature.shape == (BATCH, HIDDEN)

    # Correctness validation against the pure-JAX reference (exact conv check).
    conv_ref, feat_ref = reference_forward(params, input_ids, att_masks, vec_idx_arr)
    assert jnp.allclose(x_feature, feat_ref, rtol=1e-2, atol=1e-2)
    assert bool(jnp.all(converted_max_idx == conv_ref))

    print("KERNEL_OK")
</pallas_src>

<mosaic_0001>
module attributes {stable_mosaic.version = 11 : i64} {
  func.func @_classify_kernel(%arg0: memref<2x3xi32, #tpu.memory_space<vmem>>, %arg1: memref<6x8xi32, #tpu.memory_space<vmem>>, %arg2: memref<6x8xf32, #tpu.memory_space<vmem>>, %arg3: memref<100x32xf32, #tpu.memory_space<vmem>>, %arg4: memref<3x32x512xf32, #tpu.memory_space<vmem>>, %arg5: memref<1x512xf32, #tpu.memory_space<vmem>>, %arg6: memref<512x32xf32, #tpu.memory_space<vmem>>, %arg7: memref<1x32xf32, #tpu.memory_space<vmem>>, %arg8: memref<32x3xf32, #tpu.memory_space<vmem>>, %arg9: memref<1x3xf32, #tpu.memory_space<vmem>>, %arg10: memref<2x1xi32, #tpu.memory_space<vmem>>, %arg11: memref<2x32xf32, #tpu.memory_space<vmem>>) attributes {dimension_semantics = [], scalar_prefetch = 0 : i64, scratch_operands = 0 : i64, tpu.core_type = #tpu.core_type<tc>} {
    %c0 = arith.constant 0 : index
    %c0_0 = arith.constant 0 : index
    %0 = vector.load %arg1[%c0, %c0_0] : memref<6x8xi32, #tpu.memory_space<vmem>>, vector<6x8xi32>
    %c0_1 = arith.constant 0 : index
    %c0_2 = arith.constant 0 : index
    %1 = vector.load %arg2[%c0_1, %c0_2] : memref<6x8xf32, #tpu.memory_space<vmem>>, vector<6x8xf32>
    %cst = arith.constant dense<0.000000e+00> : vector<6xf32>
    %2 = vector.multi_reduction <add>, %1, %cst [1] : vector<6x8xf32> to vector<6xf32>
    %3 = vector.shape_cast %2 : vector<6xf32> to vector<6x1xf32>
    %cst_3 = arith.constant 1.000000e+00 : f32
    %4 = vector.broadcast %cst_3 : f32 to vector<6x1xf32>
    %5 = arith.maximumf %3, %4 : vector<6x1xf32>
    %6 = tpu.iota {dimensions = array<i32: 1>} : vector<6x100xi32>
    %7 = vector.extract_strided_slice %0 {offsets = [0, 0], sizes = [6, 1], strides = [1, 1]} : vector<6x8xi32> to vector<6x1xi32>
    %8 = vector.broadcast %7 : vector<6x1xi32> to vector<6x100xi32>
    %9 = arith.cmpi eq, %8, %6 : vector<6x100xi32>
    %10 = vector.extract_strided_slice %1 {offsets = [0, 0], sizes = [6, 1], strides = [1, 1]} : vector<6x8xf32> to vector<6x1xf32>
    %cst_4 = arith.constant 0.000000e+00 : f32
    %11 = vector.shape_cast %10 : vector<6x1xf32> to vector<6x1xf32>
    %12 = vector.broadcast %11 : vector<6x1xf32> to vector<6x100xf32>
    %13 = vector.broadcast %cst_4 : f32 to vector<6x100xf32>
    %14 = arith.select %9, %12, %13 : vector<6x100xi1>, vector<6x100xf32>
    %15 = vector.extract_strided_slice %0 {offsets = [0, 1], sizes = [6, 1], strides = [1, 1]} : vector<6x8xi32> to vector<6x1xi32>
    %16 = vector.broadcast %15 : vector<6x1xi32> to vector<6x100xi32>
    %17 = arith.cmpi eq, %16, %6 : vector<6x100xi32>
    %18 = vector.extract_strided_slice %1 {offsets = [0, 1], sizes = [6, 1], strides = [1, 1]} : vector<6x8xf32> to vector<6x1xf32>
    %cst_5 = arith.constant 0.000000e+00 : f32
    %19 = vector.shape_cast %18 : vector<6x1xf32> to vector<6x1xf32>
    %20 = vector.broadcast %19 : vector<6x1xf32> to vector<6x100xf32>
    %21 = vector.broadcast %cst_5 : f32 to vector<6x100xf32>
    %22 = arith.select %17, %20, %21 : vector<6x100xi1>, vector<6x100xf32>
    %23 = arith.addf %14, %22 : vector<6x100xf32>
    %24 = vector.extract_strided_slice %0 {offsets = [0, 2], sizes = [6, 1], strides = [1, 1]} : vector<6x8xi32> to vector<6x1xi32>
    %25 = vector.broadcast %24 : vector<6x1xi32> to vector<6x100xi32>
    %26 = arith.cmpi eq, %25, %6 : vector<6x100xi32>
    %27 = vector.extract_strided_slice %1 {offsets = [0, 2], sizes = [6, 1], strides = [1, 1]} : vector<6x8xf32> to vector<6x1xf32>
    %cst_6 = arith.constant 0.000000e+00 : f32
    %28 = vector.shape_cast %27 : vector<6x1xf32> to vector<6x1xf32>
    %29 = vector.broadcast %28 : vector<6x1xf32> to vector<6x100xf32>
    %30 = vector.broadcast %cst_6 : f32 to vector<6x100xf32>
    %31 = arith.select %26, %29, %30 : vector<6x100xi1>, vector<6x100xf32>
    %32 = arith.addf %23, %31 : vector<6x100xf32>
    %33 = vector.extract_strided_slice %0 {offsets = [0, 3], sizes = [6, 1], strides = [1, 1]} : vector<6x8xi32> to vector<6x1xi32>
    %34 = vector.broadcast %33 : vector<6x1xi32> to vector<6x100xi32>
    %35 = arith.cmpi eq, %34, %6 : vector<6x100xi32>
    %36 = vector.extract_strided_slice %1 {offsets = [0, 3], sizes = [6, 1], strides = [1, 1]} : vector<6x8xf32> to vector<6x1xf32>
    %cst_7 = arith.constant 0.000000e+00 : f32
    %37 = vector.shape_cast %36 : vector<6x1xf32> to vector<6x1xf32>
    %38 = vector.broadcast %37 : vector<6x1xf32> to vector<6x100xf32>
    %39 = vector.broadcast %cst_7 : f32 to vector<6x100xf32>
    %40 = arith.select %35, %38, %39 : vector<6x100xi1>, vector<6x100xf32>
    %41 = arith.addf %32, %40 : vector<6x100xf32>
    %42 = vector.extract_strided_slice %0 {offsets = [0, 4], sizes = [6, 1], strides = [1, 1]} : vector<6x8xi32> to vector<6x1xi32>
    %43 = vector.broadcast %42 : vector<6x1xi32> to vector<6x100xi32>
    %44 = arith.cmpi eq, %43, %6 : vector<6x100xi32>
    %45 = vector.extract_strided_slice %1 {offsets = [0, 4], sizes = [6, 1], strides = [1, 1]} : vector<6x8xf32> to vector<6x1xf32>
    %cst_8 = arith.constant 0.000000e+00 : f32
    %46 = vector.shape_cast %45 : vector<6x1xf32> to vector<6x1xf32>
    %47 = vector.broadcast %46 : vector<6x1xf32> to vector<6x100xf32>
    %48 = vector.broadcast %cst_8 : f32 to vector<6x100xf32>
    %49 = arith.select %44, %47, %48 : vector<6x100xi1>, vector<6x100xf32>
    %50 = arith.addf %41, %49 : vector<6x100xf32>
    %51 = vector.extract_strided_slice %0 {offsets = [0, 5], sizes = [6, 1], strides = [1, 1]} : vector<6x8xi32> to vector<6x1xi32>
    %52 = vector.broadcast %51 : vector<6x1xi32> to vector<6x100xi32>
    %53 = arith.cmpi eq, %52, %6 : vector<6x100xi32>
    %54 = vector.extract_strided_slice %1 {offsets = [0, 5], sizes = [6, 1], strides = [1, 1]} : vector<6x8xf32> to vector<6x1xf32>
    %cst_9 = arith.constant 0.000000e+00 : f32
    %55 = vector.shape_cast %54 : vector<6x1xf32> to vector<6x1xf32>
    %56 = vector.broadcast %55 : vector<6x1xf32> to vector<6x100xf32>
    %57 = vector.broadcast %cst_9 : f32 to vector<6x100xf32>
    %58 = arith.select %53, %56, %57 : vector<6x100xi1>, vector<6x100xf32>
    %59 = arith.addf %50, %58 : vector<6x100xf32>
    %60 = vector.extract_strided_slice %0 {offsets = [0, 6], sizes = [6, 1], strides = [1, 1]} : vector<6x8xi32> to vector<6x1xi32>
    %61 = vector.broadcast %60 : vector<6x1xi32> to vector<6x100xi32>
    %62 = arith.cmpi eq, %61, %6 : vector<6x100xi32>
    %63 = vector.extract_strided_slice %1 {offsets = [0, 6], sizes = [6, 1], strides = [1, 1]} : vector<6x8xf32> to vector<6x1xf32>
    %cst_10 = arith.constant 0.000000e+00 : f32
    %64 = vector.shape_cast %63 : vector<6x1xf32> to vector<6x1xf32>
    %65 = vector.broadcast %64 : vector<6x1xf32> to vector<6x100xf32>
    %66 = vector.broadcast %cst_10 : f32 to vector<6x100xf32>
    %67 = arith.select %62, %65, %66 : vector<6x100xi1>, vector<6x100xf32>
    %68 = arith.addf %59, %67 : vector<6x100xf32>
    %69 = vector.extract_strided_slice %0 {offsets = [0, 7], sizes = [6, 1], strides = [1, 1]} : vector<6x8xi32> to vector<6x1xi32>
    %70 = vector.broadcast %69 : vector<6x1xi32> to vector<6x100xi32>
    %71 = arith.cmpi eq, %70, %6 : vector<6x100xi32>
    %72 = vector.extract_strided_slice %1 {offsets = [0, 7], sizes = [6, 1], strides = [1, 1]} : vector<6x8xf32> to vector<6x1xf32>
    %cst_11 = arith.constant 0.000000e+00 : f32
    %73 = vector.shape_cast %72 : vector<6x1xf32> to vector<6x1xf32>
    %74 = vector.broadcast %73 : vector<6x1xf32> to vector<6x100xf32>
    %75 = vector.broadcast %cst_11 : f32 to vector<6x100xf32>
    %76 = arith.select %71, %74, %75 : vector<6x100xi1>, vector<6x100xf32>
    %77 = arith.addf %68, %76 : vector<6x100xf32>
    %c0_12 = arith.constant 0 : index
    %c0_13 = arith.constant 0 : index
    %78 = vector.load %arg3[%c0_12, %c0_13] : memref<100x32xf32, #tpu.memory_space<vmem>>, vector<100x32xf32>
    %cst_14 = arith.constant dense<0.000000e+00> : vector<6x32xf32>
    %79 = tpu.matmul %77, %78, %cst_14 {dimension_numbers = #tpu.dot_dimension_numbers<[1], [0], [0], [1], [0, 0, 1, 1], [], []>} : vector<6x100xf32>, vector<100x32xf32>, vector<6x32xf32> -> vector<6x32xf32>
    %80 = vector.broadcast %5 : vector<6x1xf32> to vector<6x32xf32>
    %81 = arith.divf %79, %80 : vector<6x32xf32>
    %82 = math.tanh %81 : vector<6x32xf32>
    %83 = vector.extract_strided_slice %82 {offsets = [0, 0], sizes = [2, 32], strides = [1, 1]} : vector<6x32xf32> to vector<2x32xf32>
    %c0_15 = arith.constant 0 : index
    %c0_16 = arith.constant 0 : index
    %c0_17 = arith.constant 0 : index
    %84 = vector.load %arg4[%c0_15, %c0_16, %c0_17] : memref<3x32x512xf32, #tpu.memory_space<vmem>>, vector<1x32x512xf32>
    %85 = vector.shape_cast %84 : vector<1x32x512xf32> to vector<32x512xf32>
    %cst_18 = arith.constant dense<0.000000e+00> : vector<2x512xf32>
    %86 = tpu.matmul %83, %85, %cst_18 {dimension_numbers = #tpu.dot_dimension_numbers<[1], [0], [0], [1], [0, 0, 1, 1], [], []>} : vector<2x32xf32>, vector<32x512xf32>, vector<2x512xf32> -> vector<2x512xf32>
    %87 = vector.extract_strided_slice %82 {offsets = [2, 0], sizes = [2, 32], strides = [1, 1]} : vector<6x32xf32> to vector<2x32xf32>
    %c1 = arith.constant 1 : index
    %c0_19 = arith.constant 0 : index
    %c0_20 = arith.constant 0 : index
    %88 = vector.load %arg4[%c1, %c0_19, %c0_20] : memref<3x32x512xf32, #tpu.memory_space<vmem>>, vector<1x32x512xf32>
    %89 = vector.shape_cast %88 : vector<1x32x512xf32> to vector<32x512xf32>
    %cst_21 = arith.constant dense<0.000000e+00> : vector<2x512xf32>
    %90 = tpu.matmul %87, %89, %cst_21 {dimension_numbers = #tpu.dot_dimension_numbers<[1], [0], [0], [1], [0, 0, 1, 1], [], []>} : vector<2x32xf32>, vector<32x512xf32>, vector<2x512xf32> -> vector<2x512xf32>
    %91 = arith.addf %86, %90 : vector<2x512xf32>
    %92 = vector.extract_strided_slice %82 {offsets = [4, 0], sizes = [2, 32], strides = [1, 1]} : vector<6x32xf32> to vector<2x32xf32>
    %c2 = arith.constant 2 : index
    %c0_22 = arith.constant 0 : index
    %c0_23 = arith.constant 0 : index
    %93 = vector.load %arg4[%c2, %c0_22, %c0_23] : memref<3x32x512xf32, #tpu.memory_space<vmem>>, vector<1x32x512xf32>
    %94 = vector.shape_cast %93 : vector<1x32x512xf32> to vector<32x512xf32>
    %cst_24 = arith.constant dense<0.000000e+00> : vector<2x512xf32>
    %95 = tpu.matmul %92, %94, %cst_24 {dimension_numbers = #tpu.dot_dimension_numbers<[1], [0], [0], [1], [0, 0, 1, 1], [], []>} : vector<2x32xf32>, vector<32x512xf32>, vector<2x512xf32> -> vector<2x512xf32>
    %96 = arith.addf %91, %95 : vector<2x512xf32>
    %c0_25 = arith.constant 0 : index
    %c0_26 = arith.constant 0 : index
    %97 = vector.load %arg5[%c0_25, %c0_26] : memref<1x512xf32, #tpu.memory_space<vmem>>, vector<1x512xf32>
    %98 = vector.broadcast %97 : vector<1x512xf32> to vector<2x512xf32>
    %99 = arith.addf %96, %98 : vector<2x512xf32>
    %cst_27 = arith.constant 0.000000e+00 : f32
    %100 = vector.broadcast %cst_27 : f32 to vector<2x512xf32>
    %101 = arith.maximumf %99, %100 : vector<2x512xf32>
    %c0_28 = arith.constant 0 : index
    %c0_29 = arith.constant 0 : index
    %102 = vector.load %arg6[%c0_28, %c0_29] : memref<512x32xf32, #tpu.memory_space<vmem>>, vector<512x32xf32>
    %cst_30 = arith.constant dense<0.000000e+00> : vector<2x32xf32>
    %103 = tpu.matmul %101, %102, %cst_30 {dimension_numbers = #tpu.dot_dimension_numbers<[1], [0], [0], [1], [0, 0, 1, 1], [], []>} : vector<2x512xf32>, vector<512x32xf32>, vector<2x32xf32> -> vector<2x32xf32>
    %c0_31 = arith.constant 0 : index
    %c0_32 = arith.constant 0 : index
    %104 = vector.load %arg7[%c0_31, %c0_32] : memref<1x32xf32, #tpu.memory_space<vmem>>, vector<1x32xf32>
    %105 = vector.broadcast %104 : vector<1x32xf32> to vector<2x32xf32>
    %106 = arith.addf %103, %105 : vector<2x32xf32>
    %c0_33 = arith.constant 0 : index
    %c0_34 = arith.constant 0 : index
    %107 = vector.load %arg11[%c0_33, %c0_34] : memref<2x32xf32, #tpu.memory_space<vmem>>, vector<2x32xf32>
    tpu.vector_store %arg11[%c0_33, %c0_34], %106 {strides = array<i32>} : memref<2x32xf32, #tpu.memory_space<vmem>>, vector<2x32xf32>,
    %cst_35 = arith.constant 0.000000e+00 : f32
    %108 = vector.broadcast %cst_35 : f32 to vector<2x32xf32>
    %109 = arith.maximumf %106, %108 : vector<2x32xf32>
    %c0_36 = arith.constant 0 : index
    %c0_37 = arith.constant 0 : index
    %110 = vector.load %arg8[%c0_36, %c0_37] : memref<32x3xf32, #tpu.memory_space<vmem>>, vector<32x3xf32>
    %cst_38 = arith.constant dense<0.000000e+00> : vector<2x3xf32>
    %111 = tpu.matmul %109, %110, %cst_38 {dimension_numbers = #tpu.dot_dimension_numbers<[1], [0], [0], [1], [0, 0, 1, 1], [], []>} : vector<2x32xf32>, vector<32x3xf32>, vector<2x3xf32> -> vector<2x3xf32>
    %c0_39 = arith.constant 0 : index
    %c0_40 = arith.constant 0 : index
    %112 = vector.load %arg9[%c0_39, %c0_40] : memref<1x3xf32, #tpu.memory_space<vmem>>, vector<1x3xf32>
    %113 = vector.broadcast %112 : vector<1x3xf32> to vector<2x3xf32>
    %114 = arith.addf %111, %113 : vector<2x3xf32>
    %cst_41 = arith.constant dense<0xFF800000> : vector<2xf32>
    %115 = vector.multi_reduction <maximumf>, %114, %cst_41 [1] : vector<2x3xf32> to vector<2xf32>
    %116 = vector.shape_cast %115 : vector<2xf32> to vector<2x1xf32>
    %117 = tpu.iota {dimensions = array<i32: 1>} : vector<2x3xi32>
    %118 = vector.broadcast %116 : vector<2x1xf32> to vector<2x3xf32>
    %119 = arith.cmpf oeq, %114, %118 : vector<2x3xf32>
    %c3_i32 = arith.constant 3 : i32
    %120 = vector.broadcast %c3_i32 : i32 to vector<2x3xi32>
    %121 = arith.select %119, %117, %120 : vector<2x3xi1>, vector<2x3xi32>
    %cst_42 = arith.constant dense<2147483647> : vector<2xi32>
    %122 = vector.multi_reduction <minsi>, %121, %cst_42 [1] : vector<2x3xi32> to vector<2xi32>
    %123 = vector.shape_cast %122 : vector<2xi32> to vector<2x1xi32>
    %124 = vector.broadcast %123 : vector<2x1xi32> to vector<2x3xi32>
    %125 = arith.cmpi eq, %117, %124 : vector<2x3xi32>
    %c0_43 = arith.constant 0 : index
    %c0_44 = arith.constant 0 : index
    %126 = vector.load %arg0[%c0_43, %c0_44] : memref<2x3xi32, #tpu.memory_space<vmem>>, vector<2x3xi32>
    %c0_i32 = arith.constant 0 : i32
    %127 = vector.broadcast %c0_i32 : i32 to vector<2x3xi32>
    %128 = arith.select %125, %126, %127 : vector<2x3xi1>, vector<2x3xi32>
    %cst_45 = arith.constant dense<0> : vector<2xi32>
    %129 = vector.multi_reduction <add>, %128, %cst_45 [1] : vector<2x3xi32> to vector<2xi32>
    %130 = vector.shape_cast %129 : vector<2xi32> to vector<2x1xi32>
    %c0_46 = arith.constant 0 : index
    %c0_47 = arith.constant 0 : index
    %131 = vector.load %arg10[%c0_46, %c0_47] : memref<2x1xi32, #tpu.memory_space<vmem>>, vector<2x1xi32>
    tpu.vector_store %arg10[%c0_46, %c0_47], %130 {strides = array<i32>} : memref<2x1xi32, #tpu.memory_space<vmem>>, vector<2x1xi32>,
    return
  }
}

</mosaic_0001>

<llo_original>
// kernel: classify_forward.1
$region0: #{classify_forward.1}
  #allocation0 [shape = 'u32[]', space=smem, size = 0x4, offset = 0x4, fixed_abs, tag = 'smem constant byte address 0x4 - core index']
  #allocation1 [shape = 'u32[72,128]{1,0:T(1,128)}', space=vmem, size = 0x9000, scoped, tag = 'internal scratch']
  %s0 = inlined_call_operand.vmem [shape: s32[2,3], index: 0, kind: input, shape index: {}]
  %s1 = inlined_call_operand.vmem [shape: s32[6,8], index: 1, kind: input, shape index: {}]
  %s2 = inlined_call_operand.vmem [shape: f32[6,8], index: 2, kind: input, shape index: {}]
  %s3 = inlined_call_operand.vmem [shape: f32[100,32], index: 3, kind: input, shape index: {}]
  %s4 = inlined_call_operand.vmem [shape: f32[3,32,512], index: 4, kind: input, shape index: {}]
  %s5 = inlined_call_operand.vmem [shape: f32[1,512], index: 5, kind: input, shape index: {}]
  %s6 = inlined_call_operand.vmem [shape: f32[512,32], index: 6, kind: input, shape index: {}]
  %s7 = inlined_call_operand.vmem [shape: f32[1,32], index: 7, kind: input, shape index: {}]
  %s8 = inlined_call_operand.vmem [shape: f32[32,3], index: 8, kind: input, shape index: {}]
  %s9 = inlined_call_operand.vmem [shape: f32[1,3], index: 9, kind: input, shape index: {}]
  %s10 = inlined_call_operand.vmem [shape: s32[2,1], index: 10, kind: output, shape index: {0}]
  %s11 = inlined_call_operand.hbm [shape: f32[2,32], index: 11, kind: output, shape index: {1}]
  %12 = xla_tuple %s10, %s11
  %s13 = sld [smem:[#allocation0]]
  $region58: #{classify_forward.1} parent=0
    _
  %s15 = ssub.s32 1, %s13
  %s16 = scalar_select 0, %s15, %s13
  $region1: #{classify_forward.1} parent=0
    #allocation2 [shape = 'u8[1024]{0}', space=vmem, size = 0x400, scoped, tag = 'output window, operand 1, single buffered']
    #allocation3 [shape = 's32[1]{0}', space=sflag, size = 0x4, scoped, tag = 'scoped memory for classify_forward.1']
    %17 = vsyncpa [#allocation3], 0
    // Predicated region
    $region2: #{classify_forward.1} parent=1 // pred_check
      _
    $region3: #{classify_forward.1} parent=1 // pred_check_branch
      %19 = sbr.rel (0) target = $region5
    $region4: #{classify_forward.1} parent=1 // pred_region
      _
    $region5: #{classify_forward.1} parent=1 // pred_fallthru
      _
    // Predicated region
    $region6: #{classify_forward.1} parent=1 // pred_check
      _
    $region7: #{classify_forward.1} parent=1 // pred_check_branch
      %21 = sbr.rel (0) target = $region9
    $region8: #{classify_forward.1} parent=1 // pred_region
      _
    $region9: #{classify_forward.1} parent=1 // pred_fallthru
      _
    // Predicated region
    $region10: #{classify_forward.1} parent=1 // pred_check
      _
    $region11: #{classify_forward.1} parent=1 // pred_check_branch
      %23 = sbr.rel (0) target = $region13
    $region12: #{classify_forward.1} parent=1 // pred_region
      _
    $region13: #{classify_forward.1} parent=1 // pred_fallthru
      _
    // Predicated region
    $region14: #{classify_forward.1} parent=1 // pred_check
      _
    $region15: #{classify_forward.1} parent=1 // pred_check_branch
      %25 = sbr.rel (0) target = $region17
    $region16: #{classify_forward.1} parent=1 // pred_region
      _
    $region17: #{classify_forward.1} parent=1 // pred_fallthru
      _
    // Predicated region
    $region18: #{classify_forward.1} parent=1 // pred_check
      _
    $region19: #{classify_forward.1} parent=1 // pred_check_branch
      %27 = sbr.rel (0) target = $region21
    $region20: #{classify_forward.1} parent=1 // pred_region
      _
    $region21: #{classify_forward.1} parent=1 // pred_fallthru
      _
    // Predicated region
    $region22: #{classify_forward.1} parent=1 // pred_check
      _
    $region23: #{classify_forward.1} parent=1 // pred_check_branch
      %29 = sbr.rel (0) target = $region25
    $region24: #{classify_forward.1} parent=1 // pred_region
      _
    $region25: #{classify_forward.1} parent=1 // pred_fallthru
      _
    // Predicated region
    $region26: #{classify_forward.1} parent=1 // pred_check
      _
    $region27: #{classify_forward.1} parent=1 // pred_check_branch
      %31 = sbr.rel (0) target = $region29
    $region28: #{classify_forward.1} parent=1 // pred_region
      _
    $region29: #{classify_forward.1} parent=1 // pred_fallthru
      _
    // Predicated region
    $region30: #{classify_forward.1} parent=1 // pred_check
      _
    $region31: #{classify_forward.1} parent=1 // pred_check_branch
      %33 = sbr.rel (0) target = $region33
    $region32: #{classify_forward.1} parent=1 // pred_region
      _
    $region33: #{classify_forward.1} parent=1 // pred_fallthru
      _
    // Predicated region
    $region34: #{classify_forward.1} parent=1 // pred_check
      _
    $region35: #{classify_forward.1} parent=1 // pred_check_branch
      %35 = sbr.rel (0) target = $region37
    $region36: #{classify_forward.1} parent=1 // pred_region
      _
    $region37: #{classify_forward.1} parent=1 // pred_fallthru
      _
    // Predicated region
    $region38: #{classify_forward.1} parent=1 // pred_check
      _
    $region39: #{classify_forward.1} parent=1 // pred_check_branch
      %37 = sbr.rel (0) target = $region41
    $region40: #{classify_forward.1} parent=1 // pred_region
      _
    $region41: #{classify_forward.1} parent=1 // pred_fallthru
      _
    %v38 = vld [vmem:[%s1] sm:$0x3f]
    %v39 = vld [vmem:[%s2] sm:$0x3f]
    %vm40 = vcmask 62464
    %v41 = vsel %vm40, %v39, 0.0
    %42 = vadd.xlane.f32.xlu0 %v41
    %v43 = vpop.xlane.xlu0 %42
    %v44 = vmax.f32 %v43, 1.0
    %v45 = vlaneseq
    %v46 = vand.u32 %v45, 127
    %47 = vset.pattern.permute.xlu0 0
    %48 = vperm.xlu0 %47, %v38
    %v49 = vpop.permute.xlu0 %48
    %vm50 = vcmp.eq.s32.totalorder %v49, %v46
    %52 = vset.pattern.permute.xlu0 0
    %53 = vperm.xlu0 %52, %v39
    %v54 = vpop.permute.xlu0 %53
    %v56 = vsel %vm50, %v54, 0.0
    %57 = vset.pattern.permute.xlu0 1
    %58 = vperm.xlu0 %57, %v38
    %v59 = vpop.permute.xlu0 %58
    %vm60 = vcmp.eq.s32.totalorder %v59, %v46
    %61 = vset.pattern.permute.xlu0 1
    %62 = vperm.xlu0 %61, %v39
    %v63 = vpop.permute.xlu0 %62
    %v65 = vsel %vm60, %v63, 0.0
    %v66 = vadd.f32 %v56, %v65
    %67 = vset.pattern.permute.xlu0 2
    %68 = vperm.xlu0 %67, %v38
    %v69 = vpop.permute.xlu0 %68
    %vm70 = vcmp.eq.s32.totalorder %v69, %v46
    %71 = vset.pattern.permute.xlu0 2
    %72 = vperm.xlu0 %71, %v39
    %v73 = vpop.permute.xlu0 %72
    %v75 = vsel %vm70, %v73, 0.0
    %v76 = vadd.f32 %v66, %v75
    %77 = vset.pattern.permute.xlu0 3
    %78 = vperm.xlu0 %77, %v38
    %v79 = vpop.permute.xlu0 %78
    %vm80 = vcmp.eq.s32.totalorder %v79, %v46
    %81 = vset.pattern.permute.xlu0 3
    %82 = vperm.xlu0 %81, %v39
    %v83 = vpop.permute.xlu0 %82
    %v85 = vsel %vm80, %v83, 0.0
    %v86 = vadd.f32 %v76, %v85
    %87 = vset.pattern.permute.xlu0 4
    %88 = vperm.xlu0 %87, %v38
    %v89 = vpop.permute.xlu0 %88
    %vm90 = vcmp.eq.s32.totalorder %v89, %v46
    %91 = vset.pattern.permute.xlu0 4
    %92 = vperm.xlu0 %91, %v39
    %v93 = vpop.permute.xlu0 %92
    %v95 = vsel %vm90, %v93, 0.0
    %v96 = vadd.f32 %v86, %v95
    %97 = vset.pattern.permute.xlu0 5
    %98 = vperm.xlu0 %97, %v38
    %v99 = vpop.permute.xlu0 %98
    %vm100 = vcmp.eq.s32.totalorder %v99, %v46
    %101 = vset.pattern.permute.xlu0 5
    %102 = vperm.xlu0 %101, %v39
    %v103 = vpop.permute.xlu0 %102
    %v105 = vsel %vm100, %v103, 0.0
    %v106 = vadd.f32 %v96, %v105
    %107 = vset.pattern.permute.xlu0 6
    %108 = vperm.xlu0 %107, %v38
    %v109 = vpop.permute.xlu0 %108
    %vm110 = vcmp.eq.s32.totalorder %v109, %v46
    %111 = vset.pattern.permute.xlu0 6
    %112 = vperm.xlu0 %111, %v39
    %v113 = vpop.permute.xlu0 %112
    %v115 = vsel %vm110, %v113, 0.0
    %v116 = vadd.f32 %v106, %v115
    %117 = vset.pattern.permute.xlu0 7
    %118 = vperm.xlu0 %117, %v38
    %v119 = vpop.permute.xlu0 %118
    %vm120 = vcmp.eq.s32.totalorder %v119, %v46
    %121 = vset.pattern.permute.xlu0 7
    %122 = vperm.xlu0 %121, %v39
    %v123 = vpop.permute.xlu0 %122
    %v125 = vsel %vm120, %v123, 0.0
    %v126 = vadd.f32 %v116, %v125
    %v127 = vld [vmem:[%s3] sm:$0xff]
    %v128 = vld [vmem:[%s3 + $0x8] sm:$0xff]
    %v129 = vld [vmem:[%s3 + $0x10] sm:$0xff]
    %v130 = vld [vmem:[%s3 + $0x18] sm:$0xff]
    %v131 = vld [vmem:[%s3 + $0x20] sm:$0xff]
    %v132 = vld [vmem:[%s3 + $0x28] sm:$0xff]
    %v133 = vld [vmem:[%s3 + $0x30] sm:$0xff]
    %v134 = vld [vmem:[%s3 + $0x38] sm:$0xff]
    %v135 = vld [vmem:[%s3 + $0x40] sm:$0xff]
    %v136 = vld [vmem:[%s3 + $0x48] sm:$0xff]
    %v137 = vld [vmem:[%s3 + $0x50] sm:$0xff]
    %v138 = vld [vmem:[%s3 + $0x58] sm:$0xff]
    %v139 = vld [vmem:[%s3 + $0x60] sm:$0xf]
    %vm140 = vcmask 818176
    %v142 = vsel %vm140, %v126, 0
    %vm144 = vcmask 1043456
    %v146 = vsel %vm144, %v139, 0
    %148 = vmatpush.msra.mxu0 0.0
    %149 = vmatpush.msra.mxu0 0.0
    %150 = vmatpush.msra.mxu0 0.0
    %151 = vmatpush.msra.mxu0 %v146
    %152 = vmatpush.msra.mxu0 %v138
    %153 = vmatpush.msra.mxu0 %v137
    %154 = vmatpush.msra.mxu0 %v136
    %155 = vmatpush.msra.mxu0 %v135
    %156 = vmatpush.msra.mxu0 %v134
    %157 = vmatpush.msra.mxu0 %v133
    %158 = vmatpush.msra.mxu0 %v132
    %159 = vmatpush.msra.mxu0 %v131
    %160 = vmatpush.msra.mxu0 %v130
    %161 = vmatpush.msra.mxu0 %v129
    %162 = vmatpush.msra.mxu0 %v128
    %163 = vmatpush.msra.mxu0 %v127
    %164 = vmatmul.f32.gmra.mxu0 %v142
    %v165 = vpop.f32.mrf.mxu0
    %v166 = vadd.f32 0.0, %v165
    %167 = vdwg.mxu0
    %v168 = vrcp.pop %v44
    %v169 = vmul.f32 %v44, %v168
    %v170 = vsub.f32 1.0, %v169
    %v171 = vmul.f32 %v168, %v170
    %v172 = vadd.f32 %v168, %v171
    %vm173 = vweird.f32 %v44
    %vm174 = vweird.f32 %v168
    %vm175 = vmor %vm173, %vm174
    %v176 = vsel %vm175, %v168, %v172
    %v177 = vand.u32 2147483647, %v44
    %vm178 = vcmp.eq.f32.partialorder %v177, 8.507059e+37
    %v179 = vand.u32 %v44, 2147483648
    %v180 = vor.u32 1.1754944e-38, %v179
    %v181 = vsel %vm178, %v180, %v176
    %v182 = vmul.f32 %v166, %v181
    %v183 = vtanh.pop %v182
    %v184 = vld [vmem:[%s4] sm:$0xff]
    %v185 = vld [vmem:[%s4 + $0x8] sm:$0xff]
    %v186 = vld [vmem:[%s4 + $0x10] sm:$0xff]
    %v187 = vld [vmem:[%s4 + $0x18] sm:$0xff]
    %v188 = vld [vmem:[%s4 + $0x20] sm:$0xff]
    %v189 = vld [vmem:[%s4 + $0x28] sm:$0xff]
    %v190 = vld [vmem:[%s4 + $0x30] sm:$0xff]
    %v191 = vld [vmem:[%s4 + $0x38] sm:$0xff]
    %v192 = vld [vmem:[%s4 + $0x40] sm:$0xff]
    %v193 = vld [vmem:[%s4 + $0x48] sm:$0xff]
    %v194 = vld [vmem:[%s4 + $0x50] sm:$0xff]
    %v195 = vld [vmem:[%s4 + $0x58] sm:$0xff]
    %v196 = vld [vmem:[%s4 + $0x60] sm:$0xff]
    %v197 = vld [vmem:[%s4 + $0x68] sm:$0xff]
    %v198 = vld [vmem:[%s4 + $0x70] sm:$0xff]
    %v199 = vld [vmem:[%s4 + $0x78] sm:$0xff]
    %s200 = scalar_lea.vmem %s4, 128
    %v201 = vld [vmem:[%s200] sm:$0xff]
    %v202 = vld [vmem:[%s200 + $0x8] sm:$0xff]
    %v203 = vld [vmem:[%s200 + $0x10] sm:$0xff]
    %v204 = vld [vmem:[%s200 + $0x18] sm:$0xff]
    %v205 = vld [vmem:[%s200 + $0x20] sm:$0xff]
    %v206 = vld [vmem:[%s200 + $0x28] sm:$0xff]
    %v207 = vld [vmem:[%s200 + $0x30] sm:$0xff]
    %v208 = vld [vmem:[%s200 + $0x38] sm:$0xff]
    %v209 = vld [vmem:[%s200 + $0x40] sm:$0xff]
    %v210 = vld [vmem:[%s200 + $0x48] sm:$0xff]
    %v211 = vld [vmem:[%s200 + $0x50] sm:$0xff]
    %v212 = vld [vmem:[%s200 + $0x58] sm:$0xff]
    %v213 = vld [vmem:[%s200 + $0x60] sm:$0xff]
    %v214 = vld [vmem:[%s200 + $0x68] sm:$0xff]
    %v215 = vld [vmem:[%s200 + $0x70] sm:$0xff]
    %v216 = vld [vmem:[%s200 + $0x78] sm:$0xff]
    %v218 = vrot.slane %v183, 2
    %vm219 = vcmask 261120
    %v220 = vsel %vm219, %v218, 0
    %222 = vmatpush.msra.mxu0 0.0
    %223 = vmatpush.msra.mxu0 0.0
    %224 = vmatpush.msra.mxu0 0.0
    %225 = vmatpush.msra.mxu0 0.0
    %226 = vmatpush.msra.mxu0 0.0
    %227 = vmatpush.msra.mxu0 0.0
    %228 = vmatpush.msra.mxu0 0.0
    %229 = vmatpush.msra.mxu0 0.0
    %230 = vmatpush.msra.mxu0 0.0
    %231 = vmatpush.msra.mxu0 0.0
    %232 = vmatpush.msra.mxu0 0.0
    %233 = vmatpush.msra.mxu0 0.0
    %234 = vmatpush.msra.mxu0 %v213
    %235 = vmatpush.msra.mxu0 %v209
    %236 = vmatpush.msra.mxu0 %v205
    %237 = vmatpush.msra.mxu0 %v201
    %238 = vmatmul.f32.gmra.mxu0 %v220
    %v239 = vpop.f32.mrf.mxu0
    %v240 = vadd.f32 0.0, %v239
    %241 = vdwg.mxu0
    %242 = vmatpush.msra.mxu0 0.0
    %243 = vmatpush.msra.mxu0 0.0
    %244 = vmatpush.msra.mxu0 0.0
    %245 = vmatpush.msra.mxu0 0.0
    %246 = vmatpush.msra.mxu0 0.0
    %247 = vmatpush.msra.mxu0 0.0
    %248 = vmatpush.msra.mxu0 0.0
    %249 = vmatpush.msra.mxu0 0.0
    %250 = vmatpush.msra.mxu0 0.0
    %251 = vmatpush.msra.mxu0 0.0
    %252 = vmatpush.msra.mxu0 0.0
    %253 = vmatpush.msra.mxu0 0.0
    %254 = vmatpush.msra.mxu0 %v214
    %255 = vmatpush.msra.mxu0 %v210
    %256 = vmatpush.msra.mxu0 %v206
    %257 = vmatpush.msra.mxu0 %v202
    %258 = vmatmul.f32.gmra.mxu0 %v220
    %v259 = vpop.f32.mrf.mxu0
    %v260 = vadd.f32 0.0, %v259
    %261 = vdwg.mxu0
    %262 = vmatpush.msra.mxu0 0.0
    %263 = vmatpush.msra.mxu0 0.0
    %264 = vmatpush.msra.mxu0 0.0
    %265 = vmatpush.msra.mxu0 0.0
    %266 = vmatpush.msra.mxu0 0.0
    %267 = vmatpush.msra.mxu0 0.0
    %268 = vmatpush.msra.mxu0 0.0
    %269 = vmatpush.msra.mxu0 0.0
    %270 = vmatpush.msra.mxu0 0.0
    %271 = vmatpush.msra.mxu0 0.0
    %272 = vmatpush.msra.mxu0 0.0
    %273 = vmatpush.msra.mxu0 0.0
    %274 = vmatpush.msra.mxu0 %v215
    %275 = vmatpush.msra.mxu0 %v211
    %276 = vmatpush.msra.mxu0 %v207
    %277 = vmatpush.msra.mxu0 %v203
    %278 = vmatmul.f32.gmra.mxu0 %v220
    %v279 = vpop.f32.mrf.mxu0
    %v280 = vadd.f32 0.0, %v279
    %281 = vdwg.mxu0
    %282 = vmatpush.msra.mxu0 0.0
    %283 = vmatpush.msra.mxu0 0.0
    %284 = vmatpush.msra.mxu0 0.0
    %285 = vmatpush.msra.mxu0 0.0
    %286 = vmatpush.msra.mxu0 0.0
    %287 = vmatpush.msra.mxu0 0.0
    %288 = vmatpush.msra.mxu0 0.0
    %289 = vmatpush.msra.mxu0 0.0
    %290 = vmatpush.msra.mxu0 0.0
    %291 = vmatpush.msra.mxu0 0.0
    %292 = vmatpush.msra.mxu0 0.0
    %293 = vmatpush.msra.mxu0 0.0
    %294 = vmatpush.msra.mxu0 %v216
    %295 = vmatpush.msra.mxu0 %v212
    %296 = vmatpush.msra.mxu0 %v208
    %297 = vmatpush.msra.mxu0 %v204
    %298 = vmatmul.f32.gmra.mxu0 %v220
    %v299 = vpop.f32.mrf.mxu0
    %v300 = vadd.f32 0.0, %v299
    %301 = vdwg.mxu0
    %v302 = vsel %vm219, %v183, 0
    %304 = vmatpush.msra.mxu0 0.0
    %305 = vmatpush.msra.mxu0 0.0
    %306 = vmatpush.msra.mxu0 0.0
    %307 = vmatpush.msra.mxu0 0.0
    %308 = vmatpush.msra.mxu0 0.0
    %309 = vmatpush.msra.mxu0 0.0
    %310 = vmatpush.msra.mxu0 0.0
    %311 = vmatpush.msra.mxu0 0.0
    %312 = vmatpush.msra.mxu0 0.0
    %313 = vmatpush.msra.mxu0 0.0
    %314 = vmatpush.msra.mxu0 0.0
    %315 = vmatpush.msra.mxu0 0.0
    %316 = vmatpush.msra.mxu0 %v196
    %317 = vmatpush.msra.mxu0 %v192
    %318 = vmatpush.msra.mxu0 %v188
    %319 = vmatpush.msra.mxu0 %v184
    %320 = vmatmul.f32.gmra.mxu0 %v302
    %v321 = vpop.f32.mrf.mxu0
    %v322 = vadd.f32 %v240, %v321
    %323 = vdwg.mxu0
    %324 = vmatpush.msra.mxu0 0.0
    %325 = vmatpush.msra.mxu0 0.0
    %326 = vmatpush.msra.mxu0 0.0
    %327 = vmatpush.msra.mxu0 0.0
    %328 = vmatpush.msra.mxu0 0.0
    %329 = vmatpush.msra.mxu0 0.0
    %330 = vmatpush.msra.mxu0 0.0
    %331 = vmatpush.msra.mxu0 0.0
    %332 = vmatpush.msra.mxu0 0.0
    %333 = vmatpush.msra.mxu0 0.0
    %334 = vmatpush.msra.mxu0 0.0
    %335 = vmatpush.msra.mxu0 0.0
    %336 = vmatpush.msra.mxu0 %v197
    %337 = vmatpush.msra.mxu0 %v193
    %338 = vmatpush.msra.mxu0 %v189
    %339 = vmatpush.msra.mxu0 %v185
    %340 = vmatmul.f32.gmra.mxu0 %v302
    %v341 = vpop.f32.mrf.mxu0
    %v342 = vadd.f32 %v260, %v341
    %343 = vdwg.mxu0
    %344 = vmatpush.msra.mxu0 0.0
    %345 = vmatpush.msra.mxu0 0.0
    %346 = vmatpush.msra.mxu0 0.0
    %347 = vmatpush.msra.mxu0 0.0
    %348 = vmatpush.msra.mxu0 0.0
    %349 = vmatpush.msra.mxu0 0.0
    %350 = vmatpush.msra.mxu0 0.0
    %351 = vmatpush.msra.mxu0 0.0
    %352 = vmatpush.msra.mxu0 0.0
    %353 = vmatpush.msra.mxu0 0.0
    %354 = vmatpush.msra.mxu0 0.0
    %355 = vmatpush.msra.mxu0 0.0
    %356 = vmatpush.msra.mxu0 %v198
    %357 = vmatpush.msra.mxu0 %v194
    %358 = vmatpush.msra.mxu0 %v190
    %359 = vmatpush.msra.mxu0 %v186
    %360 = vmatmul.f32.gmra.mxu0 %v302
    %v361 = vpop.f32.mrf.mxu0
    %v362 = vadd.f32 %v280, %v361
    %363 = vdwg.mxu0
    %364 = vmatpush.msra.mxu0 0.0
    %365 = vmatpush.msra.mxu0 0.0
    %366 = vmatpush.msra.mxu0 0.0
    %367 = vmatpush.msra.mxu0 0.0
    %368 = vmatpush.msra.mxu0 0.0
    %369 = vmatpush.msra.mxu0 0.0
    %370 = vmatpush.msra.mxu0 0.0
    %371 = vmatpush.msra.mxu0 0.0
    %372 = vmatpush.msra.mxu0 0.0
    %373 = vmatpush.msra.mxu0 0.0
    %374 = vmatpush.msra.mxu0 0.0
    %375 = vmatpush.msra.mxu0 0.0
    %376 = vmatpush.msra.mxu0 %v199
    %377 = vmatpush.msra.mxu0 %v195
    %378 = vmatpush.msra.mxu0 %v191
    %379 = vmatpush.msra.mxu0 %v187
    %380 = vmatmul.f32.gmra.mxu0 %v302
    %v381 = vpop.f32.mrf.mxu0
    %v382 = vadd.f32 %v300, %v381
    %383 = vdwg.mxu0
    %s384 = scalar_lea.vmem %s4, 256
    %v385 = vld [vmem:[%s384] sm:$0xff]
    %v386 = vld [vmem:[%s384 + $0x8] sm:$0xff]
    %v387 = vld [vmem:[%s384 + $0x10] sm:$0xff]
    %v388 = vld [vmem:[%s384 + $0x18] sm:$0xff]
    %v389 = vld [vmem:[%s384 + $0x20] sm:$0xff]
    %v390 = vld [vmem:[%s384 + $0x28] sm:$0xff]
    %v391 = vld [vmem:[%s384 + $0x30] sm:$0xff]
    %v392 = vld [vmem:[%s384 + $0x38] sm:$0xff]
    %v393 = vld [vmem:[%s384 + $0x40] sm:$0xff]
    %v394 = vld [vmem:[%s384 + $0x48] sm:$0xff]
    %v395 = vld [vmem:[%s384 + $0x50] sm:$0xff]
    %v396 = vld [vmem:[%s384 + $0x58] sm:$0xff]
    %v397 = vld [vmem:[%s384 + $0x60] sm:$0xff]
    %v398 = vld [vmem:[%s384 + $0x68] sm:$0xff]
    %v399 = vld [vmem:[%s384 + $0x70] sm:$0xff]
    %v400 = vld [vmem:[%s384 + $0x78] sm:$0xff]
    %v401 = vrot.slane %v183, 4
    %v402 = vsel %vm219, %v401, 0
    %404 = vmatpush.msra.mxu0 0.0
    %405 = vmatpush.msra.mxu0 0.0
    %406 = vmatpush.msra.mxu0 0.0
    %407 = vmatpush.msra.mxu0 0.0
    %408 = vmatpush.msra.mxu0 0.0
    %409 = vmatpush.msra.mxu0 0.0
    %410 = vmatpush.msra.mxu0 0.0
    %411 = vmatpush.msra.mxu0 0.0
    %412 = vmatpush.msra.mxu0 0.0
    %413 = vmatpush.msra.mxu0 0.0
    %414 = vmatpush.msra.mxu0 0.0
    %415 = vmatpush.msra.mxu0 0.0
    %416 = vmatpush.msra.mxu0 %v397
    %417 = vmatpush.msra.mxu0 %v393
    %418 = vmatpush.msra.mxu0 %v389
    %419 = vmatpush.msra.mxu0 %v385
    %420 = vmatmul.f32.gmra.mxu0 %v402
    %v421 = vpop.f32.mrf.mxu0
    %v422 = vadd.f32 0.0, %v421
    %423 = vdwg.mxu0
    %424 = vmatpush.msra.mxu0 0.0
    %425 = vmatpush.msra.mxu0 0.0
    %426 = vmatpush.msra.mxu0 0.0
    %427 = vmatpush.msra.mxu0 0.0
    %428 = vmatpush.msra.mxu0 0.0
    %429 = vmatpush.msra.mxu0 0.0
    %430 = vmatpush.msra.mxu0 0.0
    %431 = vmatpush.msra.mxu0 0.0
    %432 = vmatpush.msra.mxu0 0.0
    %433 = vmatpush.msra.mxu0 0.0
    %434 = vmatpush.msra.mxu0 0.0
    %435 = vmatpush.msra.mxu0 0.0
    %436 = vmatpush.msra.mxu0 %v398
    %437 = vmatpush.msra.mxu0 %v394
    %438 = vmatpush.msra.mxu0 %v390
    %439 = vmatpush.msra.mxu0 %v386
    %440 = vmatmul.f32.gmra.mxu0 %v402
    %v441 = vpop.f32.mrf.mxu0
    %v442 = vadd.f32 0.0, %v441
    %443 = vdwg.mxu0
    %444 = vmatpush.msra.mxu0 0.0
    %445 = vmatpush.msra.mxu0 0.0
    %446 = vmatpush.msra.mxu0 0.0
    %447 = vmatpush.msra.mxu0 0.0
    %448 = vmatpush.msra.mxu0 0.0
    %449 = vmatpush.msra.mxu0 0.0
    %450 = vmatpush.msra.mxu0 0.0
    %451 = vmatpush.msra.mxu0 0.0
    %452 = vmatpush.msra.mxu0 0.0
    %453 = vmatpush.msra.mxu0 0.0
    %454 = vmatpush.msra.mxu0 0.0
    %455 = vmatpush.msra.mxu0 0.0
    %456 = vmatpush.msra.mxu0 %v399
    %457 = vmatpush.msra.mxu0 %v395
    %458 = vmatpush.msra.mxu0 %v391
    %459 = vmatpush.msra.mxu0 %v387
    %460 = vmatmul.f32.gmra.mxu0 %v402
    %v461 = vpop.f32.mrf.mxu0
    %v462 = vadd.f32 0.0, %v461
    %463 = vdwg.mxu0
    %464 = vmatpush.msra.mxu0 0.0
    %465 = vmatpush.msra.mxu0 0.0
    %466 = vmatpush.msra.mxu0 0.0
    %467 = vmatpush.msra.mxu0 0.0
    %468 = vmatpush.msra.mxu0 0.0
    %469 = vmatpush.msra.mxu0 0.0
    %470 = vmatpush.msra.mxu0 0.0
    %471 = vmatpush.msra.mxu0 0.0
    %472 = vmatpush.msra.mxu0 0.0
    %473 = vmatpush.msra.mxu0 0.0
    %474 = vmatpush.msra.mxu0 0.0
    %475 = vmatpush.msra.mxu0 0.0
    %476 = vmatpush.msra.mxu0 %v400
    %477 = vmatpush.msra.mxu0 %v396
    %478 = vmatpush.msra.mxu0 %v392
    %479 = vmatpush.msra.mxu0 %v388
    %480 = vmatmul.f32.gmra.mxu0 %v402
    %v481 = vpop.f32.mrf.mxu0
    %v482 = vadd.f32 0.0, %v481
    %483 = vdwg.mxu0
    %v484 = vadd.f32 %v322, %v422
    %v485 = vadd.f32 %v342, %v442
    %v486 = vadd.f32 %v362, %v462
    %v487 = vadd.f32 %v382, %v482
    %v488 = vld [vmem:[%s5] sm:$0xf]
    %v490 = vperm.slane %v488, 0
    %v491 = vperm.slane %v488, 1
    %v492 = vperm.slane %v488, 2
    %v493 = vperm.slane %v488, 3
    %v498 = vadd.f32 %v484, %v490
    %v499 = vadd.f32 %v485, %v491
    %v500 = vadd.f32 %v486, %v492
    %v501 = vadd.f32 %v487, %v493
    %v502 = vmax.f32 %v498, 0.0
    %v503 = vmax.f32 %v499, 0.0
    %v504 = vmax.f32 %v500, 0.0
    %v505 = vmax.f32 %v501, 0.0
    %v506 = vld [vmem:[%s6] sm:$0xff]
    %v507 = vld [vmem:[%s6 + $0x8] sm:$0xff]
    %v508 = vld [vmem:[%s6 + $0x10] sm:$0xff]
    %v509 = vld [vmem:[%s6 + $0x18] sm:$0xff]
    %v510 = vld [vmem:[%s6 + $0x20] sm:$0xff]
    %v511 = vld [vmem:[%s6 + $0x28] sm:$0xff]
    %v512 = vld [vmem:[%s6 + $0x30] sm:$0xff]
    %v513 = vld [vmem:[%s6 + $0x38] sm:$0xff]
    %v514 = vld [vmem:[%s6 + $0x40] sm:$0xff]
    %v515 = vld [vmem:[%s6 + $0x48] sm:$0xff]
    %v516 = vld [vmem:[%s6 + $0x50] sm:$0xff]
    %v517 = vld [vmem:[%s6 + $0x58] sm:$0xff]
    %v518 = vld [vmem:[%s6 + $0x60] sm:$0xff]
    %v519 = vld [vmem:[%s6 + $0x68] sm:$0xff]
    %v520 = vld [vmem:[%s6 + $0x70] sm:$0xff]
    %v521 = vld [vmem:[%s6 + $0x78] sm:$0xff]
    %v522 = vld [vmem:[%s6 + $0x80] sm:$0xff]
    %v523 = vld [vmem:[%s6 + $0x88] sm:$0xff]
    %v524 = vld [vmem:[%s6 + $0x90] sm:$0xff]
    %v525 = vld [vmem:[%s6 + $0x98] sm:$0xff]
    %v526 = vld [vmem:[%s6 + $0xa0] sm:$0xff]
    %v527 = vld [vmem:[%s6 + $0xa8] sm:$0xff]
    %v528 = vld [vmem:[%s6 + $0xb0] sm:$0xff]
    %v529 = vld [vmem:[%s6 + $0xb8] sm:$0xff]
    %v530 = vld [vmem:[%s6 + $0xc0] sm:$0xff]
    %v531 = vld [vmem:[%s6 + $0xc8] sm:$0xff]
    %v532 = vld [vmem:[%s6 + $0xd0] sm:$0xff]
    %v533 = vld [vmem:[%s6 + $0xd8] sm:$0xff]
    %v534 = vld [vmem:[%s6 + $0xe0] sm:$0xff]
    %v535 = vld [vmem:[%s6 + $0xe8] sm:$0xff]
    %v536 = vld [vmem:[%s6 + $0xf0] sm:$0xff]
    %v537 = vld [vmem:[%s6 + $0xf8] sm:$0xff]
    %v538 = vld [vmem:[%s6 + $0x100] sm:$0xff]
    %v539 = vld [vmem:[%s6 + $0x108] sm:$0xff]
    %v540 = vld [vmem:[%s6 + $0x110] sm:$0xff]
    %v541 = vld [vmem:[%s6 + $0x118] sm:$0xff]
    %v542 = vld [vmem:[%s6 + $0x120] sm:$0xff]
    %v543 = vld [vmem:[%s6 + $0x128] sm:$0xff]
    %v544 = vld [vmem:[%s6 + $0x130] sm:$0xff]
    %v545 = vld [vmem:[%s6 + $0x138] sm:$0xff]
    %v546 = vld [vmem:[%s6 + $0x140] sm:$0xff]
    %v547 = vld [vmem:[%s6 + $0x148] sm:$0xff]
    %v548 = vld [vmem:[%s6 + $0x150] sm:$0xff]
    %v549 = vld [vmem:[%s6 + $0x158] sm:$0xff]
    %v550 = vld [vmem:[%s6 + $0x160] sm:$0xff]
    %v551 = vld [vmem:[%s6 + $0x168] sm:$0xff]
    %v552 = vld [vmem:[%s6 + $0x170] sm:$0xff]
    %v553 = vld [vmem:[%s6 + $0x178] sm:$0xff]
    %v554 = vld [vmem:[%s6 + $0x180] sm:$0xff]
    %v555 = vld [vmem:[%s6 + $0x188] sm:$0xff]
    %v556 = vld [vmem:[%s6 + $0x190] sm:$0xff]
    %v557 = vld [vmem:[%s6 + $0x198] sm:$0xff]
    %v558 = vld [vmem:[%s6 + $0x1a0] sm:$0xff]
    %v559 = vld [vmem:[%s6 + $0x1a8] sm:$0xff]
    %v560 = vld [vmem:[%s6 + $0x1b0] sm:$0xff]
    %v561 = vld [vmem:[%s6 + $0x1b8] sm:$0xff]
    %v562 = vld [vmem:[%s6 + $0x1c0] sm:$0xff]
    %v563 = vld [vmem:[%s6 + $0x1c8] sm:$0xff]
    %v564 = vld [vmem:[%s6 + $0x1d0] sm:$0xff]
    %v565 = vld [vmem:[%s6 + $0x1d8] sm:$0xff]
    %v566 = vld [vmem:[%s6 + $0x1e0] sm:$0xff]
    %v567 = vld [vmem:[%s6 + $0x1e8] sm:$0xff]
    %v568 = vld [vmem:[%s6 + $0x1f0] sm:$0xff]
    %v569 = vld [vmem:[%s6 + $0x1f8] sm:$0xff]
    %v570 = vld [vmem:[%s7] sm:$0x1]
    %v572 = vperm.slane %v570, 0
    %574 = vmatpush.msra.mxu0 %v521
    %575 = vmatpush.msra.mxu0 %v520
    %576 = vmatpush.msra.mxu0 %v519
    %577 = vmatpush.msra.mxu0 %v518
    %578 = vmatpush.msra.mxu0 %v517
    %579 = vmatpush.msra.mxu0 %v516
    %580 = vmatpush.msra.mxu0 %v515
    %581 = vmatpush.msra.mxu0 %v514
    %582 = vmatpush.msra.mxu0 %v513
    %583 = vmatpush.msra.mxu0 %v512
    %584 = vmatpush.msra.mxu0 %v511
    %585 = vmatpush.msra.mxu0 %v510
    %586 = vmatpush.msra.mxu0 %v509
    %587 = vmatpush.msra.mxu0 %v508
    %588 = vmatpush.msra.mxu0 %v507
    %589 = vmatpush.msra.mxu0 %v506
    %590 = vmatmul.f32.gmra.mxu0 %v502
    %v591 = vpop.f32.mrf.mxu0
    %v592 = vadd.f32 %v572, %v591
    %593 = vdwg.mxu0
    %594 = vmatpush.msra.mxu0 %v537
    %595 = vmatpush.msra.mxu0 %v536
    %596 = vmatpush.msra.mxu0 %v535
    %597 = vmatpush.msra.mxu0 %v534
    %598 = vmatpush.msra.mxu0 %v533
    %599 = vmatpush.msra.mxu0 %v532
    %600 = vmatpush.msra.mxu0 %v531
    %601 = vmatpush.msra.mxu0 %v530
    %602 = vmatpush.msra.mxu0 %v529
    %603 = vmatpush.msra.mxu0 %v528
    %604 = vmatpush.msra.mxu0 %v527
    %605 = vmatpush.msra.mxu0 %v526
    %606 = vmatpush.msra.mxu0 %v525
    %607 = vmatpush.msra.mxu0 %v524
    %608 = vmatpush.msra.mxu0 %v523
    %609 = vmatpush.msra.mxu0 %v522
    %610 = vmatmul.f32.gmra.mxu0 %v503
    %v611 = vpop.f32.mrf.mxu0
    %v612 = vadd.f32 %v592, %v611
    %613 = vdwg.mxu0
    %614 = vmatpush.msra.mxu0 %v553
    %615 = vmatpush.msra.mxu0 %v552
    %616 = vmatpush.msra.mxu0 %v551
    %617 = vmatpush.msra.mxu0 %v550
    %618 = vmatpush.msra.mxu0 %v549
    %619 = vmatpush.msra.mxu0 %v548
    %620 = vmatpush.msra.mxu0 %v547
    %621 = vmatpush.msra.mxu0 %v546
    %622 = vmatpush.msra.mxu0 %v545
    %623 = vmatpush.msra.mxu0 %v544
    %624 = vmatpush.msra.mxu0 %v543
    %625 = vmatpush.msra.mxu0 %v542
    %626 = vmatpush.msra.mxu0 %v541
    %627 = vmatpush.msra.mxu0 %v540
    %628 = vmatpush.msra.mxu0 %v539
    %629 = vmatpush.msra.mxu0 %v538
    %630 = vmatmul.f32.gmra.mxu0 %v504
    %v631 = vpop.f32.mrf.mxu0
    %v632 = vadd.f32 %v612, %v631
    %633 = vdwg.mxu0
    %634 = vmatpush.msra.mxu0 %v569
    %635 = vmatpush.msra.mxu0 %v568
    %636 = vmatpush.msra.mxu0 %v567
    %637 = vmatpush.msra.mxu0 %v566
    %638 = vmatpush.msra.mxu0 %v565
    %639 = vmatpush.msra.mxu0 %v564
    %640 = vmatpush.msra.mxu0 %v563
    %641 = vmatpush.msra.mxu0 %v562
    %642 = vmatpush.msra.mxu0 %v561
    %643 = vmatpush.msra.mxu0 %v560
    %644 = vmatpush.msra.mxu0 %v559
    %645 = vmatpush.msra.mxu0 %v558
    %646 = vmatpush.msra.mxu0 %v557
    %647 = vmatpush.msra.mxu0 %v556
    %648 = vmatpush.msra.mxu0 %v555
    %649 = vmatpush.msra.mxu0 %v554
    %650 = vmatmul.f32.gmra.mxu0 %v505
    %v651 = vpop.f32.mrf.mxu0
    %v652 = vadd.f32 %v632, %v651
    %653 = vdwg.mxu0
    %vm654 = vcmask 254976
    %655 = vst.msk [vmem:[#allocation2] sm:$0x3] %vm654, %v652
    %v656 = vmax.f32 %v652, 0.0
    %v657 = vld [vmem:[%s8] sm:$0xff]
    %v658 = vld [vmem:[%s8 + $0x8] sm:$0xff]
    %v659 = vld [vmem:[%s8 + $0x10] sm:$0xff]
    %v660 = vld [vmem:[%s8 + $0x18] sm:$0xff]
    %v661 = vld [vmem:[%s9] sm:$0x1]
    %v663 = vperm.slane %v661, 0
    %v666 = vsel %vm219, %v656, 0
    %668 = vmatpush.msra.mxu0 0.0
    %669 = vmatpush.msra.mxu0 0.0
    %670 = vmatpush.msra.mxu0 0.0
    %671 = vmatpush.msra.mxu0 0.0
    %672 = vmatpush.msra.mxu0 0.0
    %673 = vmatpush.msra.mxu0 0.0
    %674 = vmatpush.msra.mxu0 0.0
    %675 = vmatpush.msra.mxu0 0.0
    %676 = vmatpush.msra.mxu0 0.0
    %677 = vmatpush.msra.mxu0 0.0
    %678 = vmatpush.msra.mxu0 0.0
    %679 = vmatpush.msra.mxu0 0.0
    %680 = vmatpush.msra.mxu0 %v660
    %681 = vmatpush.msra.mxu0 %v659
    %682 = vmatpush.msra.mxu0 %v658
    %683 = vmatpush.msra.mxu0 %v657
    %684 = vmatmul.f32.gmra.mxu0 %v666
    %v685 = vpop.f32.mrf.mxu0
    %v686 = vadd.f32 %v663, %v685
    %687 = vdwg.mxu0
    %vm688 = vcmask 17408
    %v689 = vsel %vm688, %v686, -inf
    %690 = vmax.xlane.f32.xlu0 %v689
    %v691 = vpop.xlane.xlu0 %690
    %vm692 = vcmp.eq.f32.partialorder %v686, %v691
    %v693 = vsel %vm692, %v46, 3
    %v694 = vsel %vm688, %v693, 2147483647
    %v695 = vand.u32 %v694, 65535
    %v696 = vshra.s32 %v694, 16
    %v697 = vcvt.s32.f32 %v695
    %v698 = vcvt.s32.f32 %v696
    %699 = vmin.xlane.f32.xlu0 %v698
    %v700 = vpop.xlane.xlu0 %699
    %vm701 = vcmp.eq.f32.partialorder %v698, %v700
    %v702 = vsel %vm701, %v697, inf
    %703 = vmin.xlane.f32.xlu0 %v702
    %v704 = vpop.xlane.xlu0 %703
    %v705 = vcvt.f32.s32 %v704
    %v706 = vcvt.f32.s32 %v700
    %v707 = vshll.u32 %v706, 16
    %v708 = vadd.s32 %v707, %v705
    %vm709 = vcmp.eq.s32.totalorder %v46, %v708
    %v710 = vld [vmem:[%s0] sm:$0x3]
    %v711 = vsel %vm709, %v710, 0
    %v712 = vsel %vm688, %v711, 0
    %v713 = vand.u32 %v712, 65535
    %v714 = vshrl.u32 %v712, 16
    %v715 = vcvt.s32.f32 %v713
    %v716 = vcvt.s32.f32 %v714
    %717 = vadd.xlane.f32.xlu0 %v715
    %v718 = vpop.xlane.xlu0 %717
    %719 = vadd.xlane.f32.xlu0 %v716
    %v720 = vpop.xlane.xlu0 %719
    %v721 = vcvt.f32.s32 %v718
    %v722 = vcvt.f32.s32 %v720
    %v723 = vshll.u32 %v722, 16
    %v724 = vadd.s32 %v723, %v721
    %vm725 = vcmask 1024
    %726 = vst.msk [vmem:[%s10] sm:$0x3] %vm725, %v724
    // Predicated region
    $region42: #{classify_forward.1} parent=1 // pred_check
      _
    $region43: #{classify_forward.1} parent=1 // pred_check_branch
      %728 = sbr.rel (0) target = $region45
    $region44: #{classify_forward.1} parent=1 // pred_region
      _
    $region45: #{classify_forward.1} parent=1 // pred_fallthru
      _
    // Predicated region
    $region46: #{classify_forward.1} parent=1 // pred_check
      _
    $region47: #{classify_forward.1} parent=1 // pred_check_branch
      %730 = sbr.rel (0) target = $region49
    $region48: #{classify_forward.1} parent=1 // pred_region
      %732 = vsyncadd [#allocation3], 0
      %s734 = sshll.u32 [#allocation2], 4
      %s735 = int_to_ptr.vmem [resolvable:$true] %s734
      %s736 = sshll.u32 %s11, 4
      %s737 = int_to_ptr.hbm [resolvable:$true] %s736
      %739 = dma.vmem_to_hbm [thread:$0]  %s735, 32, %s737, [#allocation3]
    $region49: #{classify_forward.1} parent=1 // pred_fallthru
      _
    // Predicated region
    $region50: #{classify_forward.1} parent=1 // pred_check
      _
    $region51: #{classify_forward.1} parent=1 // pred_check_branch
      %741 = sbr.rel (0) target = $region53
    $region52: #{classify_forward.1} parent=1 // pred_region
      _
    $region53: #{classify_forward.1} parent=1 // pred_fallthru
      _
    // Predicated region
    $region54: #{classify_forward.1} parent=1 // pred_check
      _
    $region55: #{classify_forward.1} parent=1 // pred_check_branch
      %743 = sbr.rel (0) target = $region57
    $region56: #{classify_forward.1} parent=1 // pred_region
      %745 = dma.done [#allocation3], 32
    $region57: #{classify_forward.1} parent=1 // pred_fallthru
      _
    %746 = vsyncpa [#allocation3], 1

</llo_original>
